<compile_context>
chip_gen: v6e
topology: v6e:2x2x1
jax: 0.10.0
libtpu: 0.0.40
codegen_flags: <defaults>
</compile_context>

<pallas_src>
import jax
import jax.numpy as jnp
from jax.experimental import pallas as pl
from jax.experimental.pallas import tpu as pltpu


# ---------------------------------------------------------------------------
# Path 1: zero-copy identity via buffer aliasing (preferred).
# ---------------------------------------------------------------------------
def _alias_noop_kernel(x_ref, o_ref):
    # Output aliases the input buffer: data is already in place, nothing to do.
    del x_ref, o_ref


def _db_tunnel_aliased(x: jax.Array) -> jax.Array:
    return pl.pallas_call(
        _alias_noop_kernel,
        out_shape=jax.ShapeDtypeStruct(x.shape, x.dtype),
        in_specs=[pl.BlockSpec(memory_space=pl.ANY)],
        out_specs=pl.BlockSpec(memory_space=pl.ANY),
        input_output_aliases={0: 0},
    )(x)


# Donate the input so XLA can truly alias the buffers (no hidden copy).
db_tunnel = jax.jit(_db_tunnel_aliased, donate_argnums=(0,))


# ---------------------------------------------------------------------------
# Path 2: copy that returns a fresh buffer (scales to any size).
# ---------------------------------------------------------------------------
_COLS = 512                        # lane-dense: multiple of 128 -> unmasked vst
_SMALL_BYTES = 4 * 1024 * 1024     # single-block fast path threshold
_TARGET_BLOCK_BYTES = 2 * 1024 * 1024  # ~2 MiB/block -> ~8 MiB pipelined


def _copy_kernel(x_ref, o_ref):
    o_ref[...] = x_ref[...]


def _round_up(a: int, b: int) -> int:
    return ((a + b - 1) // b) * b


def db_tunnel_copy(x: jax.Array) -> jax.Array:
    orig_shape, dtype = x.shape, x.dtype
    total = x.size
    itemsize = jnp.dtype(dtype).itemsize
    total_bytes = total * itemsize

    if total == 0:
        return jnp.empty(orig_shape, dtype)

    # ---- small arrays: single full-array block (no padding, no grid). -------
    if total_bytes <= _SMALL_BYTES:
        return pl.pallas_call(
            _copy_kernel,
            out_shape=jax.ShapeDtypeStruct(orig_shape, dtype),
        )(x)

    # ---- large arrays: tiled, lane-dense (rows, 512) copy. ------------------
    # Rows rounded to 32 so blocks stay sublane-aligned for any dtype down to
    # 8-bit packing; every store is a full 512-lane (unmasked) vst.
    rows = _round_up(pl.cdiv(total, _COLS), 32)
    block_rows = max(32, min(rows, _TARGET_BLOCK_BYTES // (_COLS * itemsize)))
    block_rows = _round_up(block_rows, 32)
    rows = _round_up(rows, block_rows)
    padded = rows * _COLS

    flat = x.reshape(-1)
    if padded != total:
        flat = jnp.pad(flat, (0, padded - total))
    x2d = flat.reshape(rows, _COLS)

    out2d = pl.pallas_call(
        _copy_kernel,
        out_shape=jax.ShapeDtypeStruct((rows, _COLS), dtype),
        grid=(rows // block_rows,),
        in_specs=[pl.BlockSpec((block_rows, _COLS), lambda i: (i, 0))],
        out_specs=pl.BlockSpec((block_rows, _COLS), lambda i: (i, 0)),
        compiler_params=pltpu.CompilerParams(
            dimension_semantics=("parallel",),
        ),
    )(x2d)

    return out2d.reshape(-1)[:total].reshape(orig_shape)


if __name__ == "__main__":
    key = jax.random.PRNGKey(0)
    x = jax.random.normal(key, (2, 4, 16, 16), dtype=jnp.float32)

    # Host-side reference taken BEFORE the aliased path donates x.
    x_ref_host = jax.device_get(x)
    x_expected = jnp.asarray(x_ref_host)

    # Path 1: zero-copy aliased identity (donates x).
    y_alias = db_tunnel(x)
    jax.block_until_ready(y_alias)
    assert y_alias.shape == x_expected.shape, (y_alias.shape, x_expected.shape)
    assert y_alias.dtype == x_expected.dtype, (y_alias.dtype, x_expected.dtype)
    assert bool(jnp.array_equal(y_alias, x_expected)), "aliased identity mismatch"

    # Path 2: fresh-buffer copy (fresh input array, no donation).
    x2 = jnp.asarray(x_ref_host)
    y_copy = db_tunnel_copy(x2)
    jax.block_until_ready(y_copy)
    assert y_copy.shape == x_expected.shape, (y_copy.shape, x_expected.shape)
    assert y_copy.dtype == x_expected.dtype, (y_copy.dtype, x_expected.dtype)
    assert bool(jnp.array_equal(y_copy, x_expected)), "tiled copy mismatch"

    print("KERNEL_OK")
</pallas_src>

<mosaic_0001>
module attributes {stable_mosaic.version = 11 : i64} {
  func.func @_alias_noop_kernel(%arg0: memref<2x4x16x16xf32, #tpu.memory_space<any>>, %arg1: memref<2x4x16x16xf32, #tpu.memory_space<any>>) attributes {dimension_semantics = [], scalar_prefetch = 0 : i64, scratch_operands = 0 : i64, tpu.core_type = #tpu.core_type<tc>} {
    return
  }
}

</mosaic_0001>

<llo_original>
// kernel: _db_tunnel_aliased.1
$region0: #{_db_tunnel_aliased.1}
  #allocation0 [shape = 'u32[]', space=smem, size = 0x4, offset = 0x4, fixed_abs, tag = 'smem constant byte address 0x4 - core index']
  #allocation1 [shape = 'u32[144,128]{1,0:T(1,128)}', space=vmem, size = 0x12000, scoped, tag = 'internal scratch']
  %s0 = inlined_call_operand.hbm [shape: f32[2,4,16,16], index: 0, kind: input, shape index: {}, may-alias: {0,1}]
  %s1 = inlined_call_operand.hbm [shape: f32[2,4,16,16], index: 1, kind: output, shape index: {}, may-alias: {0,1}]
  %s2 = sld [smem:[#allocation0]]
  $region2: #{_db_tunnel_aliased.1} parent=0
    _
  %s4 = ssub.s32 1, %s2
  %s5 = scalar_select 0, %s4, %s2

</llo_original>
